<compile_context>
chip_gen: v7x
topology: tpu7x:2x2x1
jax: 0.10.0
libtpu: 0.0.40
codegen_flags: <defaults>
</compile_context>

<pallas_src>
import functools

import jax
import jax.numpy as jnp
from jax.experimental import pallas as pl
from jax.experimental.pallas import tpu as pltpu


def make_phasenet_kernel(HW, K, Chid, Ncls, TB, compute_dtype=jnp.float32):
    """Build the kernel body with static shape constants closed over."""

    def kernel(x_ref, wct_ref, bc_ref, wfct_ref, bfc_ref, out_ref):
        # x_ref:    (1, K, TB*HW)   im2col slab for TB samples (lane-dense)
        # wct_ref:  (Chid, K)       conv weights, transposed
        # bc_ref:   (Chid, 1)       conv bias (column)
        # wfct_ref: (Ncls, Chid)    classifier weights, transposed
        # bfc_ref:  (Ncls, 1)       classifier bias (column)
        # out_ref:  (1, Ncls, TB)   logits, column-major per block

        x = x_ref[0].astype(compute_dtype)            # (K, TB*HW)
        w = wct_ref[...].astype(compute_dtype)        # (Chid, K)

        # --- fused 3x3 conv: single MXU matmul, lane-dense output ---
        acc = jnp.dot(w, x, preferred_element_type=jnp.float32)   # (Chid, TB*HW)

        # conv bias + ReLU (VPU, full-lane vregs)
        acc = jnp.maximum(acc + bc_ref[...], 0.0)                  # (Chid, TB*HW)

        # global average pool over spatial positions per sample
        feat = jnp.mean(acc.reshape(Chid, TB, HW), axis=-1)        # (Chid, TB)

        # classifier Linear (tiny matmul) + bias; keep column-major,
        # wrapper transposes the final (B, Ncls) once.
        logits = jnp.dot(wfct_ref[...], feat,
                         preferred_element_type=jnp.float32) + bfc_ref[...]  # (Ncls, TB)

        out_ref[0] = logits.astype(out_ref.dtype)

    return kernel


def _pick_block_b(B, HW, K):
    """Samples per grid step: amortize per-step overhead, keep grid >= 2."""
    if B <= 1:
        return 1
    tb = pl.cdiv(B, 2)                       # grid ~2 -> both v7x TCs busy
    # keep the per-step x block well under VMEM (<= ~8 MiB)
    tb_cap = max(1, (8 * 1024 * 1024) // (K * HW * 4))
    return max(1, min(tb, tb_cap))


@functools.partial(jax.jit, static_argnames=("compute_dtype",))
def phasenet_forward(x_nchw, wconv, bconv, wfc, bfc, compute_dtype=jnp.float32):
    """x_nchw: [B, Cin, H, W] f32; wconv: [3,3,Cin,Chid] (HWIO) -> logits [B, Ncls]."""
    B, Cin, H, W = x_nchw.shape
    Chid = wconv.shape[3]
    Ncls = wfc.shape[1]
    HW = H * W
    K = 9 * Cin

    # --- wrapper-side layout plumbing (NCHW -> NHWC, pad, im2col) ---
    x_nhwc = jnp.transpose(x_nchw, (0, 2, 3, 1))                    # (B, H, W, Cin)
    x_pad = jnp.pad(x_nhwc, ((0, 0), (1, 1), (1, 1), (0, 0)))       # (B, H+2, W+2, Cin)
    taps = [x_pad[:, dy:dy + H, dx:dx + W, :]
            for dy in range(3) for dx in range(3)]                  # 9 x (B, H, W, Cin)
    x_col = jnp.stack(taps, axis=3).reshape(B, HW, K)               # (B, HW, 9*Cin)

    # --- batch blocking ---
    TB = _pick_block_b(B, HW, K)
    nblk = pl.cdiv(B, TB)
    Bpad = nblk * TB
    if Bpad != B:
        x_col = jnp.pad(x_col, ((0, Bpad - B), (0, 0), (0, 0)))

    # lane-dense slab: (nblk, K, TB*HW)
    x_slab = (x_col.reshape(nblk, TB, HW, K)
              .transpose(0, 3, 1, 2)
              .reshape(nblk, K, TB * HW))

    # weights in the layouts the kernel wants (no in-kernel transposes)
    wconv_t = wconv.reshape(K, Chid).T        # (Chid, K)
    bconv_col = bconv.reshape(Chid, 1)        # (Chid, 1)
    wfc_t = wfc.T                             # (Ncls, Chid)
    bfc_col = bfc.reshape(Ncls, 1)            # (Ncls, 1)

    kernel = make_phasenet_kernel(HW, K, Chid, Ncls, TB, compute_dtype)

    out = pl.pallas_call(
        kernel,
        out_shape=jax.ShapeDtypeStruct((nblk, Ncls, TB), jnp.float32),
        grid_spec=pltpu.PrefetchScalarGridSpec(
            num_scalar_prefetch=0,
            grid=(nblk,),
            in_specs=[
                pl.BlockSpec((1, K, TB * HW), lambda b: (b, 0, 0)),
                pl.BlockSpec((Chid, K), lambda b: (0, 0)),
                pl.BlockSpec((Chid, 1), lambda b: (0, 0)),
                pl.BlockSpec((Ncls, Chid), lambda b: (0, 0)),
                pl.BlockSpec((Ncls, 1), lambda b: (0, 0)),
            ],
            out_specs=pl.BlockSpec((1, Ncls, TB), lambda b: (b, 0, 0)),
        ),
        compiler_params=pltpu.CompilerParams(
            dimension_semantics=("parallel",),
        ),
    )(x_slab, wconv_t, bconv_col, wfc_t, bfc_col)

    # (nblk, Ncls, TB) -> (Bpad, Ncls) -> drop batch padding
    logits = out.transpose(0, 2, 1).reshape(Bpad, Ncls)[:B]
    return logits


def _reference_forward(x_nchw, wconv, bconv, wfc, bfc):
    """Pure-JAX reference (same math, XLA conv) for a correctness check."""
    x_nhwc = jnp.transpose(x_nchw, (0, 2, 3, 1))
    y = jax.lax.conv_general_dilated(
        x_nhwc, wconv,
        window_strides=(1, 1), padding="SAME",
        dimension_numbers=("NHWC", "HWIO", "NHWC"),
    ) + bconv[None, None, None, :]
    y = jnp.maximum(y, 0.0)
    feat = jnp.mean(y, axis=(1, 2))                                 # (B, Chid)
    return feat @ wfc + bfc[None, :]


if __name__ == "__main__":
    B, Cin, H, W = 2, 4, 16, 16
    Chid, Ncls = 32, 8

    key = jax.random.PRNGKey(0)
    k_x, k_wc, k_bc, k_wf, k_bf = jax.random.split(key, 5)

    x = jax.random.normal(k_x, (B, Cin, H, W), dtype=jnp.float32)
    # deterministic synthetic parameters (HWIO conv weights, fan-in scaled)
    wconv = jax.random.normal(k_wc, (3, 3, Cin, Chid), dtype=jnp.float32) * 0.1
    bconv = jax.random.normal(k_bc, (Chid,), dtype=jnp.float32) * 0.01
    wfc = jax.random.normal(k_wf, (Chid, Ncls), dtype=jnp.float32) * 0.1
    bfc = jax.random.normal(k_bf, (Ncls,), dtype=jnp.float32) * 0.01

    out = phasenet_forward(x, wconv, bconv, wfc, bfc)
    out = jax.block_until_ready(out)

    ref = jax.block_until_ready(_reference_forward(x, wconv, bconv, wfc, bfc))
    assert out.shape == (B, Ncls)
    assert jnp.allclose(out, ref, atol=1e-4, rtol=1e-4), (out, ref)

    print("KERNEL_OK")
</pallas_src>

<mosaic_0001>
module attributes {stable_mosaic.version = 11 : i64} {
  func.func @kernel(%arg0: i32, %arg1: memref<1x36x256xf32, #tpu.memory_space<vmem>>, %arg2: memref<32x36xf32, #tpu.memory_space<vmem>>, %arg3: memref<32x1xf32, #tpu.memory_space<vmem>>, %arg4: memref<8x32xf32, #tpu.memory_space<vmem>>, %arg5: memref<8x1xf32, #tpu.memory_space<vmem>>, %arg6: memref<1x8x1xf32, #tpu.memory_space<vmem>>) attributes {dimension_semantics = [#tpu.dimension_semantics<parallel>], iteration_bounds = array<i64: 2>, scalar_prefetch = 0 : i64, scratch_operands = 0 : i64, tpu.core_type = #tpu.core_type<tc>, window_params = [{transform_indices = @transform_0, window_bounds = array<i64: 1, 36, 256>}, {pipeline_mode = #tpu.pipeline_mode<synchronous>, transform_indices = @transform_1, window_bounds = array<i64: 32, 36>}, {pipeline_mode = #tpu.pipeline_mode<synchronous>, transform_indices = @transform_2, window_bounds = array<i64: 32, 1>}, {pipeline_mode = #tpu.pipeline_mode<synchronous>, transform_indices = @transform_3, window_bounds = array<i64: 8, 32>}, {pipeline_mode = #tpu.pipeline_mode<synchronous>, transform_indices = @transform_4, window_bounds = array<i64: 8, 1>}, {transform_indices = @transform_5, window_bounds = array<i64: 1, 8, 1>}]} {
    %c0 = arith.constant 0 : index
    %c0_0 = arith.constant 0 : index
    %c0_1 = arith.constant 0 : index
    %0 = vector.load %arg1[%c0, %c0_0, %c0_1] : memref<1x36x256xf32, #tpu.memory_space<vmem>>, vector<1x36x256xf32>
    %1 = vector.shape_cast %0 : vector<1x36x256xf32> to vector<36x256xf32>
    %c0_2 = arith.constant 0 : index
    %c0_3 = arith.constant 0 : index
    %2 = vector.load %arg2[%c0_2, %c0_3] : memref<32x36xf32, #tpu.memory_space<vmem>>, vector<32x36xf32>
    %cst = arith.constant dense<0.000000e+00> : vector<32x256xf32>
    %3 = tpu.matmul %2, %1, %cst {dimension_numbers = #tpu.dot_dimension_numbers<[1], [0], [0], [1], [0, 0, 1, 1], [], []>} : vector<32x36xf32>, vector<36x256xf32>, vector<32x256xf32> -> vector<32x256xf32>
    %c0_4 = arith.constant 0 : index
    %c0_5 = arith.constant 0 : index
    %4 = vector.load %arg3[%c0_4, %c0_5] : memref<32x1xf32, #tpu.memory_space<vmem>>, vector<32x1xf32>
    %5 = vector.broadcast %4 : vector<32x1xf32> to vector<32x256xf32>
    %6 = arith.addf %3, %5 : vector<32x256xf32>
    %cst_6 = arith.constant 0.000000e+00 : f32
    %7 = vector.broadcast %cst_6 : f32 to vector<32x256xf32>
    %8 = arith.maximumf %6, %7 : vector<32x256xf32>
    %9 = vector.shape_cast %8 : vector<32x256xf32> to vector<32x1x256xf32>
    %cst_7 = arith.constant dense<0.000000e+00> : vector<32x1xf32>
    %10 = vector.multi_reduction <add>, %9, %cst_7 [2] : vector<32x1x256xf32> to vector<32x1xf32>
    %cst_8 = arith.constant 2.560000e+02 : f32
    %11 = vector.broadcast %cst_8 : f32 to vector<32x1xf32>
    %12 = arith.divf %10, %11 : vector<32x1xf32>
    %c0_9 = arith.constant 0 : index
    %c0_10 = arith.constant 0 : index
    %13 = vector.load %arg4[%c0_9, %c0_10] : memref<8x32xf32, #tpu.memory_space<vmem>>, vector<8x32xf32>
    %cst_11 = arith.constant dense<0.000000e+00> : vector<8x1xf32>
    %14 = tpu.matmul %13, %12, %cst_11 {dimension_numbers = #tpu.dot_dimension_numbers<[1], [0], [0], [1], [0, 0, 1, 1], [], []>} : vector<8x32xf32>, vector<32x1xf32>, vector<8x1xf32> -> vector<8x1xf32>
    %c0_12 = arith.constant 0 : index
    %c0_13 = arith.constant 0 : index
    %15 = vector.load %arg5[%c0_12, %c0_13] : memref<8x1xf32, #tpu.memory_space<vmem>>, vector<8x1xf32>
    %16 = arith.addf %14, %15 : vector<8x1xf32>
    %c0_14 = arith.constant 0 : index
    %c0_15 = arith.constant 0 : index
    %c0_16 = arith.constant 0 : index
    %17 = vector.load %arg6[%c0_14, %c0_15, %c0_16] : memref<1x8x1xf32, #tpu.memory_space<vmem>>, vector<1x8x1xf32>
    %18 = vector.shape_cast %17 : vector<1x8x1xf32> to vector<8x1xf32>
    %19 = vector.shape_cast %16 : vector<8x1xf32> to vector<1x8x1xf32>
    tpu.vector_store %arg6[%c0_14, %c0_15, %c0_16], %19 {strides = array<i32>} : memref<1x8x1xf32, #tpu.memory_space<vmem>>, vector<1x8x1xf32>,
    return
  }
  func.func @transform_0(%arg0: i32) -> (i32, i32, i32) {
    %c0_i32 = arith.constant 0 : i32
    %c0_i32_0 = arith.constant 0 : i32
    %c0_i32_1 = arith.constant 0 : i32
    return %arg0, %c0_i32, %c0_i32_0 : i32, i32, i32
  }
  func.func @transform_1(%arg0: i32) -> (i32, i32) {
    %c0_i32 = arith.constant 0 : i32
    %c0_i32_0 = arith.constant 0 : i32
    %c0_i32_1 = arith.constant 0 : i32
    return %c0_i32, %c0_i32_0 : i32, i32
  }
  func.func @transform_2(%arg0: i32) -> (i32, i32) {
    %c0_i32 = arith.constant 0 : i32
    %c0_i32_0 = arith.constant 0 : i32
    %c0_i32_1 = arith.constant 0 : i32
    return %c0_i32, %c0_i32_0 : i32, i32
  }
  func.func @transform_3(%arg0: i32) -> (i32, i32) {
    %c0_i32 = arith.constant 0 : i32
    %c0_i32_0 = arith.constant 0 : i32
    %c0_i32_1 = arith.constant 0 : i32
    return %c0_i32, %c0_i32_0 : i32, i32
  }
  func.func @transform_4(%arg0: i32) -> (i32, i32) {
    %c0_i32 = arith.constant 0 : i32
    %c0_i32_0 = arith.constant 0 : i32
    %c0_i32_1 = arith.constant 0 : i32
    return %c0_i32, %c0_i32_0 : i32, i32
  }
  func.func @transform_5(%arg0: i32) -> (i32, i32, i32) {
    %c0_i32 = arith.constant 0 : i32
    %c0_i32_0 = arith.constant 0 : i32
    %c0_i32_1 = arith.constant 0 : i32
    return %arg0, %c0_i32, %c0_i32_0 : i32, i32, i32
  }
}

</mosaic_0001>

<llo_original>
// kernel: phasenet_forward.1
$region0: #{phasenet_forward.1}
  #allocation0 [shape = 'u32[]', space=smem, size = 0x4, offset = 0x4, fixed_abs, tag = 'smem constant byte address 0x4 - core index']
  #allocation1 [shape = 'u32[144,128]{1,0:T(1,128)}', space=vmem, size = 0x12000, scoped, tag = 'internal scratch']
  %s0 = inlined_call_operand.vmem [shape: f32[2,36,256], index: 0, kind: input, shape index: {}]
  %s1 = inlined_call_operand.vmem [shape: f32[32,36], index: 1, kind: input, shape index: {}]
  %s2 = inlined_call_operand.vmem [shape: f32[32,1], index: 2, kind: input, shape index: {}]
  %s3 = inlined_call_operand.vmem [shape: f32[8,32], index: 3, kind: input, shape index: {}]
  %s4 = inlined_call_operand.vmem [shape: f32[8,1], index: 4, kind: input, shape index: {}]
  %s5 = inlined_call_operand.vmem [shape: f32[2,8,1], index: 5, kind: output, shape index: {}]
  %s6 = sld [smem:[#allocation0]]
  $region53: #{phasenet_forward.1} parent=0
    _
  %s8 = ssub.s32 1, %s6
  %s9 = scalar_select 0, %s8, %s6
  loop: start=0, step=1, limit=4
  $region2: #{phasenet_forward.1} parent=0 // loop_pre_header
    _
  $region3: #{phasenet_forward.1} parent=0 // loop_header
    %s11 = sphi 0, %s15
    %p12 = scmp.ge.s32.totalorder %s11, 4
    %s21 = sphi 0, %s23
    %s24 = sphi 0, %s21
    %s25 = sphi 0, %s24
    %s41 = sphi 0, %s25
    %s45 = sphi 0, %s45
    %s47 = sphi 0, %s45
    %s48 = sphi 0, %s47
    %s62 = sphi 0, %s48
    %s66 = sphi 0, %s66
    %s68 = sphi 0, %s66
    %s69 = sphi 0, %s68
    %s83 = sphi 0, %s69
    %s87 = sphi 0, %s87
    %s89 = sphi 0, %s87
    %s90 = sphi 0, %s89
    %s104 = sphi 0, %s90
    %s108 = sphi 0, %s108
    %s110 = sphi 0, %s108
    %s111 = sphi 0, %s110
    %s125 = sphi 0, %s111
    %s131 = sphi 0, %s133
    %s134 = sphi 0, %s131
    %s135 = sphi 0, %s134
    %s151 = sphi 0, %s135
  $region4: #{phasenet_forward.1} parent=0 // loop_header_branch
    %14 = sbr.rel (%p12) target = $region8
  $region5: #{phasenet_forward.1} parent=0 // loop_body
    %s16 = ssub.s32 %s11, 1
    %s17 = ssub.s32 %s11, 2
    %s18 = sadd.s32 %s11, 1
    %s19 = ssub.s32 %s11, %s18
    %p20 = scmp.eq.s32.totalorder %s19, 0
    %s22 = sadd.s32 %s21, 1
    %s23 = scalar_select %p20, %s21, %s22
    %p26 = pneg %p20
    %p27 = scmp.eq.s32.totalorder %s11, 1
    %p28 = por %p26, %p27
    %p29 = scmp.ne.s32.totalorder %s21, %s24
    %p30 = scmp.eq.s32.totalorder %s11, 0
    %p31 = por %p29, %p30
    %p32 = scmp.ne.s32.totalorder %s21, %s24
    %p33 = scmp.eq.s32.totalorder %s16, 1
    %p34 = por %p32, %p33
    %p35 = scmp.ne.s32.totalorder %s24, %s25
    %p36 = scmp.eq.s32.totalorder %s16, 0
    %p37 = por %p35, %p36
    %p38 = scmp.ne.s32.totalorder %s24, %s25
    %p39 = scmp.eq.s32.totalorder %s17, 1
    %p40 = por %p38, %p39
    %p42 = scmp.ne.s32.totalorder %s25, %s41
    %p43 = scmp.eq.s32.totalorder %s17, 0
    %p44 = por %p42, %p43
    %s46 = sadd.s32 %s45, 1
    %p49 = scmp.eq.s32.totalorder %s11, 1
    %p50 = scmp.ne.s32.totalorder %s45, %s47
    %p51 = scmp.eq.s32.totalorder %s11, 0
    %p52 = por %p50, %p51
    %p53 = scmp.ne.s32.totalorder %s45, %s47
    %p54 = scmp.eq.s32.totalorder %s16, 1
    %p55 = por %p53, %p54
    %p56 = scmp.ne.s32.totalorder %s47, %s48
    %p57 = scmp.eq.s32.totalorder %s16, 0
    %p58 = por %p56, %p57
    %p59 = scmp.ne.s32.totalorder %s47, %s48
    %p60 = scmp.eq.s32.totalorder %s17, 1
    %p61 = por %p59, %p60
    %p63 = scmp.ne.s32.totalorder %s48, %s62
    %p64 = scmp.eq.s32.totalorder %s17, 0
    %p65 = por %p63, %p64
    %s67 = sadd.s32 %s66, 1
    %p70 = scmp.eq.s32.totalorder %s11, 1
    %p71 = scmp.ne.s32.totalorder %s66, %s68
    %p72 = scmp.eq.s32.totalorder %s11, 0
    %p73 = por %p71, %p72
    %p74 = scmp.ne.s32.totalorder %s66, %s68
    %p75 = scmp.eq.s32.totalorder %s16, 1
    %p76 = por %p74, %p75
    %p77 = scmp.ne.s32.totalorder %s68, %s69
    %p78 = scmp.eq.s32.totalorder %s16, 0
    %p79 = por %p77, %p78
    %p80 = scmp.ne.s32.totalorder %s68, %s69
    %p81 = scmp.eq.s32.totalorder %s17, 1
    %p82 = por %p80, %p81
    %p84 = scmp.ne.s32.totalorder %s69, %s83
    %p85 = scmp.eq.s32.totalorder %s17, 0
    %p86 = por %p84, %p85
    %s88 = sadd.s32 %s87, 1
    %p91 = scmp.eq.s32.totalorder %s11, 1
    %p92 = scmp.ne.s32.totalorder %s87, %s89
    %p93 = scmp.eq.s32.totalorder %s11, 0
    %p94 = por %p92, %p93
    %p95 = scmp.ne.s32.totalorder %s87, %s89
    %p96 = scmp.eq.s32.totalorder %s16, 1
    %p97 = por %p95, %p96
    %p98 = scmp.ne.s32.totalorder %s89, %s90
    %p99 = scmp.eq.s32.totalorder %s16, 0
    %p100 = por %p98, %p99
    %p101 = scmp.ne.s32.totalorder %s89, %s90
    %p102 = scmp.eq.s32.totalorder %s17, 1
    %p103 = por %p101, %p102
    %p105 = scmp.ne.s32.totalorder %s90, %s104
    %p106 = scmp.eq.s32.totalorder %s17, 0
    %p107 = por %p105, %p106
    %s109 = sadd.s32 %s108, 1
    %p112 = scmp.eq.s32.totalorder %s11, 1
    %p113 = scmp.ne.s32.totalorder %s108, %s110
    %p114 = scmp.eq.s32.totalorder %s11, 0
    %p115 = por %p113, %p114
    %p116 = scmp.ne.s32.totalorder %s108, %s110
    %p117 = scmp.eq.s32.totalorder %s16, 1
    %p118 = por %p116, %p117
    %p119 = scmp.ne.s32.totalorder %s110, %s111
    %p120 = scmp.eq.s32.totalorder %s16, 0
    %p121 = por %p119, %p120
    %p122 = scmp.ne.s32.totalorder %s110, %s111
    %p123 = scmp.eq.s32.totalorder %s17, 1
    %p124 = por %p122, %p123
    %p126 = scmp.ne.s32.totalorder %s111, %s125
    %p127 = scmp.eq.s32.totalorder %s17, 0
    %p128 = por %p126, %p127
    %s129 = ssub.s32 %s11, %s18
    %p130 = scmp.eq.s32.totalorder %s129, 0
    %s132 = sadd.s32 %s131, 1
    %s133 = scalar_select %p130, %s131, %s132
    %p136 = pneg %p130
    %p137 = scmp.eq.s32.totalorder %s11, 1
    %p138 = por %p136, %p137
    %p139 = scmp.ne.s32.totalorder %s131, %s134
    %p140 = scmp.eq.s32.totalorder %s11, 0
    %p141 = por %p139, %p140
    %p142 = scmp.ne.s32.totalorder %s131, %s134
    %p143 = scmp.eq.s32.totalorder %s16, 1
    %p144 = por %p142, %p143
    %p145 = scmp.ne.s32.totalorder %s134, %s135
    %p146 = scmp.eq.s32.totalorder %s16, 0
    %p147 = por %p145, %p146
    %p148 = scmp.ne.s32.totalorder %s134, %s135
    %p149 = scmp.eq.s32.totalorder %s17, 1
    %p150 = por %p148, %p149
    %p152 = scmp.ne.s32.totalorder %s135, %s151
    %p153 = scmp.eq.s32.totalorder %s17, 0
    %p154 = por %p152, %p153
    %p155 = scmp.le.s32.totalorder 1, %s11
    %p156 = scmp.lt.s32.totalorder %s11, 3
    %p157 = pnand %p155, %p156
    %p158 = pneg %p157
    // Predicated region
    $region9: #{phasenet_forward.1} parent=5 // pred_check
      _
    $region10: #{phasenet_forward.1} parent=5 // pred_check_branch
      %160 = sbr.rel (%p157) target = $region12
    $region11: #{phasenet_forward.1} parent=5 // pred_region
      %s161 = ssub.s32 %s11, 1
      // Predicated region
      $region13: #{phasenet_forward.1} parent=11 // pred_check
        %p162 = pneg %p58
      $region14: #{phasenet_forward.1} parent=11 // pred_check_branch
        %164 = sbr.rel (%p162) target = $region16
      $region15: #{phasenet_forward.1} parent=11 // pred_region
        _
      $region16: #{phasenet_forward.1} parent=11 // pred_fallthru
        _
      // Predicated region
      $region17: #{phasenet_forward.1} parent=11 // pred_check
        %p165 = pneg %p79
      $region18: #{phasenet_forward.1} parent=11 // pred_check_branch
        %167 = sbr.rel (%p165) target = $region20
      $region19: #{phasenet_forward.1} parent=11 // pred_region
        _
      $region20: #{phasenet_forward.1} parent=11 // pred_fallthru
        _
      // Predicated region
      $region21: #{phasenet_forward.1} parent=11 // pred_check
        %p168 = pneg %p100
      $region22: #{phasenet_forward.1} parent=11 // pred_check_branch
        %170 = sbr.rel (%p168) target = $region24
      $region23: #{phasenet_forward.1} parent=11 // pred_region
        _
      $region24: #{phasenet_forward.1} parent=11 // pred_fallthru
        _
      // Predicated region
      $region25: #{phasenet_forward.1} parent=11 // pred_check
        %p171 = pneg %p121
      $region26: #{phasenet_forward.1} parent=11 // pred_check_branch
        %173 = sbr.rel (%p171) target = $region28
      $region27: #{phasenet_forward.1} parent=11 // pred_region
        _
      $region28: #{phasenet_forward.1} parent=11 // pred_fallthru
        _
    $region12: #{phasenet_forward.1} parent=5 // pred_fallthru
      _
    %p174 = scmp.lt.s32.totalorder %s11, 2
    // Predicated region
    $region29: #{phasenet_forward.1} parent=5 // pred_check
      %p175 = pneg %p174
    $region30: #{phasenet_forward.1} parent=5 // pred_check_branch
      %177 = sbr.rel (%p175) target = $region32
    $region31: #{phasenet_forward.1} parent=5 // pred_region
      // Predicated region
      $region33: #{phasenet_forward.1} parent=31 // pred_check
        %p178 = pneg %p31
      $region34: #{phasenet_forward.1} parent=31 // pred_check_branch
        %180 = sbr.rel (%p178) target = $region36
      $region35: #{phasenet_forward.1} parent=31 // pred_region
        %p181 = scmp.lt.s32.totalorder %s11, 1
        %s182 = scalar_select %p181, %s11, 1
        %s183 = smul.addr %s182, 10
        %s184 = smul.addr %s183, 8
        %s185 = scalar_lea.vmem %s0, %s184
      $region36: #{phasenet_forward.1} parent=31 // pred_fallthru
        _
    $region32: #{phasenet_forward.1} parent=5 // pred_fallthru
      _
    %p186 = scmp.le.s32.totalorder 1, %s11
    %p187 = scmp.lt.s32.totalorder %s11, 3
    %p188 = pnand %p186, %p187
    %p189 = pneg %p188
    // Predicated region
    $region37: #{phasenet_forward.1} parent=5 // pred_check
      _
    $region38: #{phasenet_forward.1} parent=5 // pred_check_branch
      %191 = sbr.rel (%p188) target = $region40
    $region39: #{phasenet_forward.1} parent=5 // pred_region
      %s192 = ssub.s32 %s11, 1
      %p193 = scmp.lt.s32.totalorder %s16, 1
      %s194 = scalar_select %p193, %s16, 1
      %s195 = smul.addr %s194, 10
      %s196 = smul.addr %s195, 8
      %s197 = scalar_lea.vmem %s0, %s196
      %p198 = pneg %p37
      %p199 = pneg %p34
      %p200 = pneg %p58
      %p201 = pneg %p55
      %p202 = pneg %p79
      %p203 = pneg %p76
      %p204 = pneg %p100
      %p205 = pneg %p97
      %p206 = pneg %p121
      %p207 = pneg %p118
      %p208 = pneg %p147
      %p209 = pneg %p144
      %p210 = scmp.lt.s32.totalorder %s16, 1
      %s211 = scalar_select %p210, %s16, 1
      %s212 = smul.addr %s211, 8
      %s213 = scalar_lea.vmem %s5, %s212
      %p214 = scmp.lt.s32.totalorder %s16, 1
      %s215 = scalar_select %p214, %s16, 1
      %s216 = smul.addr %s215, 10
      %s217 = smul.addr %s216, 8
      %s218 = scalar_lea.vmem %s0, %s217
      %p219 = scmp.lt.s32.totalorder %s16, 1
      %s220 = scalar_select %p219, %s16, 1
      %s221 = smul.addr %s220, 8
      %s222 = scalar_lea.vmem %s5, %s221
      %v223 = vld [vmem:[%s218] sm:$0xff]
      %v224 = vld [vmem:[%s218 + $0x8] sm:$0xff]
      %v225 = vld [vmem:[%s218 + $0x10] sm:$0xff]
      %v226 = vld [vmem:[%s218 + $0x18] sm:$0xff]
      %v227 = vld [vmem:[%s218 + $0x20] sm:$0xff]
      %v228 = vld [vmem:[%s218 + $0x28] sm:$0xff]
      %v229 = vld [vmem:[%s218 + $0x30] sm:$0xff]
      %v230 = vld [vmem:[%s218 + $0x38] sm:$0xff]
      %v231 = vld [vmem:[%s218 + $0x40] sm:$0xf]
      %v232 = vld [vmem:[%s218 + $0x48] sm:$0xf]
      %v233 = vld [vmem:[%s1] sm:$0xff]
      %v234 = vld [vmem:[%s1 + $0x8] sm:$0xff]
      %v235 = vld [vmem:[%s1 + $0x10] sm:$0xff]
      %v236 = vld [vmem:[%s1 + $0x18] sm:$0xff]
      %v237 = vld [vmem:[%s2] sm:$0xff]
      %v238 = vld [vmem:[%s2 + $0x8] sm:$0xff]
      %v239 = vld [vmem:[%s2 + $0x10] sm:$0xff]
      %v240 = vld [vmem:[%s2 + $0x18] sm:$0xff]
      %242 = vset.pattern.permute.xlu0 0
      %243 = vperm.xlu0 %242, %v237
      %v244 = vpop.permute.xlu0 %243
      %247 = vset.pattern.permute.xlu0 0
      %248 = vperm.xlu0 %247, %v238
      %v249 = vpop.permute.xlu0 %248
      %252 = vset.pattern.permute.xlu0 0
      %253 = vperm.xlu0 %252, %v239
      %v254 = vpop.permute.xlu0 %253
      %257 = vset.pattern.permute.xlu0 0
      %258 = vperm.xlu0 %257, %v240
      %v259 = vpop.permute.xlu0 %258
      %vm261 = vcmask 293888
      %v263 = vsel %vm261, %v233, 0
      %v266 = vsel %vm261, %v234, 0
      %v269 = vsel %vm261, %v235, 0
      %v272 = vsel %vm261, %v236, 0
      %vm274 = vcmask 1043456
      %v276 = vsel %vm274, %v231, 0
      %v279 = vsel %vm274, %v232, 0
      %281 = vmatprep.subr.mxu0 %v224
      %282 = vmatpush1.msra.mxu0 %v223
      %283 = vmatprep.subr.mxu0 %v226
      %284 = vmatpush1.msra.mxu0 %v225
      %285 = vmatprep.subr.mxu0 %v228
      %286 = vmatpush1.msra.mxu0 %v227
      %287 = vmatprep.subr.mxu0 %v230
      %288 = vmatpush1.msra.mxu0 %v229
      %289 = vmatprep.subr.mxu0 %v279
      %290 = vmatpush1.msra.mxu0 %v276
      %291 = vmatprep.subr.mxu0 0.0
      %292 = vmatpush1.msra.mxu0 0.0
      %293 = vmatprep.subr.mxu0 0.0
      %294 = vmatpush1.msra.mxu0 0.0
      %295 = vmatprep.subr.mxu0 0.0
      %296 = vmatpush1.msra.mxu0 0.0
      %297 = vmatprep.subr.mxu0 0.0
      %298 = vmatpush1.msra.mxu0 0.0
      %299 = vmatprep.subr.mxu0 0.0
      %300 = vmatpush1.msra.mxu0 0.0
      %301 = vmatprep.subr.mxu0 0.0
      %302 = vmatpush1.msra.mxu0 0.0
      %303 = vmatprep.subr.mxu0 0.0
      %304 = vmatpush1.msra.mxu0 0.0
      %305 = vmatprep.subr.mxu0 0.0
      %306 = vmatpush1.msra.mxu0 0.0
      %307 = vmatprep.subr.mxu0 0.0
      %308 = vmatpush1.msra.mxu0 0.0
      %309 = vmatprep.subr.mxu0 0.0
      %310 = vmatpush1.msra.mxu0 0.0
      %311 = vmatprep.subr.mxu0 0.0
      %312 = vmatpush1.msra.mxu0 0.0
      %313 = vmatprep.subr.mxu0 0.0
      %314 = vmatpush1.msra.mxu0 0.0
      %315 = vmatprep.subr.mxu0 0.0
      %316 = vmatpush1.msra.mxu0 0.0
      %317 = vmatprep.subr.mxu0 0.0
      %318 = vmatpush1.msra.mxu0 0.0
      %319 = vmatprep.subr.mxu0 0.0
      %320 = vmatpush1.msra.mxu0 0.0
      %321 = vmatprep.subr.mxu0 0.0
      %322 = vmatpush1.msra.mxu0 0.0
      %323 = vmatprep.subr.mxu0 0.0
      %324 = vmatpush1.msra.mxu0 0.0
      %325 = vmatprep.subr.mxu0 0.0
      %326 = vmatpush1.msra.mxu0 0.0
      %327 = vmatprep.subr.mxu0 0.0
      %328 = vmatpush1.msra.mxu0 0.0
      %329 = vmatprep.subr.mxu0 0.0
      %330 = vmatpush1.msra.mxu0 0.0
      %331 = vmatprep.subr.mxu0 0.0
      %332 = vmatpush1.msra.mxu0 0.0
      %333 = vmatprep.subr.mxu0 0.0
      %334 = vmatpush1.msra.mxu0 0.0
      %335 = vmatprep.subr.mxu0 0.0
      %336 = vmatpush1.msra.mxu0 0.0
      %337 = vmatprep.subr.mxu0 0.0
      %338 = vmatpush1.msra.mxu0 0.0
      %339 = vmatprep.subr.mxu0 0.0
      %340 = vmatpush1.msra.mxu0 0.0
      %341 = vmatprep.subr.mxu0 0.0
      %342 = vmatpush1.msra.mxu0 0.0
      %343 = vmatprep.subr.mxu0 0.0
      %344 = vmatpush1.msra.mxu0 0.0
      %345 = vmatprep.mubr.f32.mxu0 0.0
      %346 = vmatmul.mubr.f32.gmra.mrb[0].mxu0 %v263
      %v347 = vpop.f32.mrb[0].mxu0
      %v348 = vadd.f32 %v244, %v347
      %v349 = vpop.f32.mrb[0].mxu0
      %v350 = vadd.f32 %v244, %v349
      %351 = vmatprep.mubr.f32.mxu0 0.0
      %352 = vmatmul.mubr.f32.gmra.mrb[0].mxu0 %v266
      %v353 = vpop.f32.mrb[0].mxu0
      %v354 = vadd.f32 %v249, %v353
      %v355 = vpop.f32.mrb[0].mxu0
      %v356 = vadd.f32 %v249, %v355
      %357 = vmatprep.mubr.f32.mxu0 0.0
      %358 = vmatmul.mubr.f32.gmra.mrb[0].mxu0 %v269
      %v359 = vpop.f32.mrb[0].mxu0
      %v360 = vadd.f32 %v254, %v359
      %v361 = vpop.f32.mrb[0].mxu0
      %v362 = vadd.f32 %v254, %v361
      %363 = vmatprep.mubr.f32.mxu0 0.0
      %364 = vmatmul.mubr.f32.gmra.mrb[0].mxu0 %v272
      %v365 = vpop.f32.mrb[0].mxu0
      %v366 = vadd.f32 %v259, %v365
      %v367 = vpop.f32.mrb[0].mxu0
      %v368 = vadd.f32 %v259, %v367
      %369 = vdwg.mxu0
      %v370 = vmax.f32 %v348, 0.0
      %v371 = vmax.f32 %v350, 0.0
      %v372 = vmax.f32 %v354, 0.0
      %v373 = vmax.f32 %v356, 0.0
      %v374 = vmax.f32 %v360, 0.0
      %v375 = vmax.f32 %v362, 0.0
      %v376 = vmax.f32 %v366, 0.0
      %v377 = vmax.f32 %v368, 0.0
      %v386 = vcombine.low %v370, %v371
      %v387 = vcombine.high %v370, %v371
      %v389 = vunpack.c.l.s4 1966171168
      %v390 = vunpack.c.0.s8 %v389
      %v391 = vlaneseq
      %v392 = vshrl.u32 %v391, 7
      %v393 = vsub.s32 %v390, %v392
      %v394 = vrot.slane %v386, %v393
      %v396 = vunpack.c.l.s4 1966171168
      %v397 = vunpack.c.0.s8 %v396
      %v398 = vlaneseq
      %v399 = vshrl.u32 %v398, 7
      %v400 = vsub.s32 %v397, %v399
      %v401 = vrot.slane %v387, %v400
      %v402 = vcombine.high %v394, %v394
      %v403 = vcombine.high %v401, %v401
      %v405 = vunpack.c.l.s4 1966171168
      %v406 = vunpack.c.0.s8 %v405
      %v407 = vlaneseq
      %v408 = vshrl.u32 %v407, 7
      %v409 = vsub.s32 %v406, %v408
      %v410 = vrot.slane %v394, %v409
      %v412 = vunpack.c.l.s4 1966171168
      %v413 = vunpack.c.0.s8 %v412
      %v414 = vlaneseq
      %v415 = vshrl.u32 %v414, 7
      %v416 = vsub.s32 %v413, %v415
      %v417 = vrot.slane %v401, %v416
      %v419 = vunpack.c.l.s4 1966171168
      %v420 = vunpack.c.0.s8 %v419
      %v421 = vlaneseq
      %v422 = vshrl.u32 %v421, 7
      %v423 = vsub.s32 %v420, %v422
      %v424 = vrot.slane %v402, %v423
      %v426 = vunpack.c.l.s4 1966171168
      %v427 = vunpack.c.0.s8 %v426
      %v428 = vlaneseq
      %v429 = vshrl.u32 %v428, 7
      %v430 = vsub.s32 %v427, %v429
      %v431 = vrot.slane %v403, %v430
      %v432 = vcombine.high %v410, %v410
      %v433 = vcombine.high %v417, %v417
      %v434 = vcombine.high %v424, %v424
      %v435 = vcombine.high %v431, %v431
      %v436 = vcombine.low %v372, %v373
      %v437 = vcombine.high %v372, %v373
      %v439 = vunpack.c.l.s4 1966171168
      %v440 = vunpack.c.0.s8 %v439
      %v441 = vlaneseq
      %v442 = vshrl.u32 %v441, 7
      %v443 = vsub.s32 %v440, %v442
      %v444 = vrot.slane %v436, %v443
      %v446 = vunpack.c.l.s4 1966171168
      %v447 = vunpack.c.0.s8 %v446
      %v448 = vlaneseq
      %v449 = vshrl.u32 %v448, 7
      %v450 = vsub.s32 %v447, %v449
      %v451 = vrot.slane %v437, %v450
      %v452 = vcombine.high %v444, %v444
      %v453 = vcombine.high %v451, %v451
      %v455 = vunpack.c.l.s4 1966171168
      %v456 = vunpack.c.0.s8 %v455
      %v457 = vlaneseq
      %v458 = vshrl.u32 %v457, 7
      %v459 = vsub.s32 %v456, %v458
      %v460 = vrot.slane %v444, %v459
      %v462 = vunpack.c.l.s4 1966171168
      %v463 = vunpack.c.0.s8 %v462
      %v464 = vlaneseq
      %v465 = vshrl.u32 %v464, 7
      %v466 = vsub.s32 %v463, %v465
      %v467 = vrot.slane %v451, %v466
      %v469 = vunpack.c.l.s4 1966171168
      %v470 = vunpack.c.0.s8 %v469
      %v471 = vlaneseq
      %v472 = vshrl.u32 %v471, 7
      %v473 = vsub.s32 %v470, %v472
      %v474 = vrot.slane %v452, %v473
      %v476 = vunpack.c.l.s4 1966171168
      %v477 = vunpack.c.0.s8 %v476
      %v478 = vlaneseq
      %v479 = vshrl.u32 %v478, 7
      %v480 = vsub.s32 %v477, %v479
      %v481 = vrot.slane %v453, %v480
      %v482 = vcombine.high %v460, %v460
      %v483 = vcombine.high %v467, %v467
      %v484 = vcombine.high %v474, %v474
      %v485 = vcombine.high %v481, %v481
      %v486 = vcombine.low %v374, %v375
      %v487 = vcombine.high %v374, %v375
      %v489 = vunpack.c.l.s4 1966171168
      %v490 = vunpack.c.0.s8 %v489
      %v491 = vlaneseq
      %v492 = vshrl.u32 %v491, 7
      %v493 = vsub.s32 %v490, %v492
      %v494 = vrot.slane %v486, %v493
      %v496 = vunpack.c.l.s4 1966171168
      %v497 = vunpack.c.0.s8 %v496
      %v498 = vlaneseq
      %v499 = vshrl.u32 %v498, 7
      %v500 = vsub.s32 %v497, %v499
      %v501 = vrot.slane %v487, %v500
      %v502 = vcombine.high %v494, %v494
      %v503 = vcombine.high %v501, %v501
      %v505 = vunpack.c.l.s4 1966171168
      %v506 = vunpack.c.0.s8 %v505
      %v507 = vlaneseq
      %v508 = vshrl.u32 %v507, 7
      %v509 = vsub.s32 %v506, %v508
      %v510 = vrot.slane %v494, %v509
      %v512 = vunpack.c.l.s4 1966171168
      %v513 = vunpack.c.0.s8 %v512
      %v514 = vlaneseq
      %v515 = vshrl.u32 %v514, 7
      %v516 = vsub.s32 %v513, %v515
      %v517 = vrot.slane %v501, %v516
      %v519 = vunpack.c.l.s4 1966171168
      %v520 = vunpack.c.0.s8 %v519
      %v521 = vlaneseq
      %v522 = vshrl.u32 %v521, 7
      %v523 = vsub.s32 %v520, %v522
      %v524 = vrot.slane %v502, %v523
      %v526 = vunpack.c.l.s4 1966171168
      %v527 = vunpack.c.0.s8 %v526
      %v528 = vlaneseq
      %v529 = vshrl.u32 %v528, 7
      %v530 = vsub.s32 %v527, %v529
      %v531 = vrot.slane %v503, %v530
      %v532 = vcombine.high %v510, %v510
      %v533 = vcombine.high %v517, %v517
      %v534 = vcombine.high %v524, %v524
      %v535 = vcombine.high %v531, %v531
      %v536 = vcombine.low %v376, %v377
      %v537 = vcombine.high %v376, %v377
      %v539 = vunpack.c.l.s4 1966171168
      %v540 = vunpack.c.0.s8 %v539
      %v541 = vlaneseq
      %v542 = vshrl.u32 %v541, 7
      %v543 = vsub.s32 %v540, %v542
      %v544 = vrot.slane %v536, %v543
      %v546 = vunpack.c.l.s4 1966171168
      %v547 = vunpack.c.0.s8 %v546
      %v548 = vlaneseq
      %v549 = vshrl.u32 %v548, 7
      %v550 = vsub.s32 %v547, %v549
      %v551 = vrot.slane %v537, %v550
      %v552 = vcombine.high %v544, %v544
      %v553 = vcombine.high %v551, %v551
      %v555 = vunpack.c.l.s4 1966171168
      %v556 = vunpack.c.0.s8 %v555
      %v557 = vlaneseq
      %v558 = vshrl.u32 %v557, 7
      %v559 = vsub.s32 %v556, %v558
      %v560 = vrot.slane %v544, %v559
      %v562 = vunpack.c.l.s4 1966171168
      %v563 = vunpack.c.0.s8 %v562
      %v564 = vlaneseq
      %v565 = vshrl.u32 %v564, 7
      %v566 = vsub.s32 %v563, %v565
      %v567 = vrot.slane %v551, %v566
      %v569 = vunpack.c.l.s4 1966171168
      %v570 = vunpack.c.0.s8 %v569
      %v571 = vlaneseq
      %v572 = vshrl.u32 %v571, 7
      %v573 = vsub.s32 %v570, %v572
      %v574 = vrot.slane %v552, %v573
      %v576 = vunpack.c.l.s4 1966171168
      %v577 = vunpack.c.0.s8 %v576
      %v578 = vlaneseq
      %v579 = vshrl.u32 %v578, 7
      %v580 = vsub.s32 %v577, %v579
      %v581 = vrot.slane %v553, %v580
      %v582 = vcombine.high %v560, %v560
      %v583 = vcombine.high %v567, %v567
      %v584 = vcombine.high %v574, %v574
      %v585 = vcombine.high %v581, %v581
      %v586 = vlaneseq
      %v587 = vshrl.u32 %v586, 7
      %v588 = vsub.s32 0, %v587
      %v589 = vrot.slane %v410, %v588
      %v590 = vlaneseq
      %v591 = vshrl.u32 %v590, 7
      %v592 = vsub.s32 1, %v591
      %v593 = vrot.slane %v410, %v592
      %v594 = vlaneseq
      %v595 = vshrl.u32 %v594, 7
      %v596 = vsub.s32 0, %v595
      %v597 = vrot.slane %v424, %v596
      %v598 = vlaneseq
      %v599 = vshrl.u32 %v598, 7
      %v600 = vsub.s32 1, %v599
      %v601 = vrot.slane %v424, %v600
      %v602 = vlaneseq
      %v603 = vshrl.u32 %v602, 7
      %v604 = vsub.s32 0, %v603
      %v605 = vrot.slane %v432, %v604
      %v606 = vlaneseq
      %v607 = vshrl.u32 %v606, 7
      %v608 = vsub.s32 1, %v607
      %v609 = vrot.slane %v432, %v608
      %v610 = vlaneseq
      %v611 = vshrl.u32 %v610, 7
      %v612 = vsub.s32 0, %v611
      %v613 = vrot.slane %v434, %v612
      %v614 = vlaneseq
      %v615 = vshrl.u32 %v614, 7
      %v616 = vsub.s32 1, %v615
      %v617 = vrot.slane %v434, %v616
      %v618 = vlaneseq
      %v619 = vshrl.u32 %v618, 7
      %v620 = vsub.s32 0, %v619
      %v621 = vrot.slane %v417, %v620
      %v622 = vlaneseq
      %v623 = vshrl.u32 %v622, 7
      %v624 = vsub.s32 1, %v623
      %v625 = vrot.slane %v417, %v624
      %v626 = vlaneseq
      %v627 = vshrl.u32 %v626, 7
      %v628 = vsub.s32 0, %v627
      %v629 = vrot.slane %v431, %v628
      %v630 = vlaneseq
      %v631 = vshrl.u32 %v630, 7
      %v632 = vsub.s32 1, %v631
      %v633 = vrot.slane %v431, %v632
      %v634 = vlaneseq
      %v635 = vshrl.u32 %v634, 7
      %v636 = vsub.s32 0, %v635
      %v637 = vrot.slane %v433, %v636
      %v638 = vlaneseq
      %v639 = vshrl.u32 %v638, 7
      %v640 = vsub.s32 1, %v639
      %v641 = vrot.slane %v433, %v640
      %v642 = vlaneseq
      %v643 = vshrl.u32 %v642, 7
      %v644 = vsub.s32 0, %v643
      %v645 = vrot.slane %v435, %v644
      %v646 = vlaneseq
      %v647 = vshrl.u32 %v646, 7
      %v648 = vsub.s32 1, %v647
      %v649 = vrot.slane %v435, %v648
      %v650 = vlaneseq
      %v651 = vshrl.u32 %v650, 7
      %v652 = vsub.s32 0, %v651
      %v653 = vrot.slane %v460, %v652
      %v654 = vlaneseq
      %v655 = vshrl.u32 %v654, 7
      %v656 = vsub.s32 1, %v655
      %v657 = vrot.slane %v460, %v656
      %v658 = vlaneseq
      %v659 = vshrl.u32 %v658, 7
      %v660 = vsub.s32 0, %v659
      %v661 = vrot.slane %v474, %v660
      %v662 = vlaneseq
      %v663 = vshrl.u32 %v662, 7
      %v664 = vsub.s32 1, %v663
      %v665 = vrot.slane %v474, %v664
      %v666 = vlaneseq
      %v667 = vshrl.u32 %v666, 7
      %v668 = vsub.s32 0, %v667
      %v669 = vrot.slane %v482, %v668
      %v670 = vlaneseq
      %v671 = vshrl.u32 %v670, 7
      %v672 = vsub.s32 1, %v671
      %v673 = vrot.slane %v482, %v672
      %v674 = vlaneseq
      %v675 = vshrl.u32 %v674, 7
      %v676 = vsub.s32 0, %v675
      %v677 = vrot.slane %v484, %v676
      %v678 = vlaneseq
      %v679 = vshrl.u32 %v678, 7
      %v680 = vsub.s32 1, %v679
      %v681 = vrot.slane %v484, %v680
      %v682 = vlaneseq
      %v683 = vshrl.u32 %v682, 7
      %v684 = vsub.s32 0, %v683
      %v685 = vrot.slane %v467, %v684
      %v686 = vlaneseq
      %v687 = vshrl.u32 %v686, 7
      %v688 = vsub.s32 1, %v687
      %v689 = vrot.slane %v467, %v688
      %v690 = vlaneseq
      %v691 = vshrl.u32 %v690, 7
      %v692 = vsub.s32 0, %v691
      %v693 = vrot.slane %v481, %v692
      %v694 = vlaneseq
      %v695 = vshrl.u32 %v694, 7
      %v696 = vsub.s32 1, %v695
      %v697 = vrot.slane %v481, %v696
      %v698 = vlaneseq
      %v699 = vshrl.u32 %v698, 7
      %v700 = vsub.s32 0, %v699
      %v701 = vrot.slane %v483, %v700
      %v702 = vlaneseq
      %v703 = vshrl.u32 %v702, 7
      %v704 = vsub.s32 1, %v703
      %v705 = vrot.slane %v483, %v704
      %v706 = vlaneseq
      %v707 = vshrl.u32 %v706, 7
      %v708 = vsub.s32 0, %v707
      %v709 = vrot.slane %v485, %v708
      %v710 = vlaneseq
      %v711 = vshrl.u32 %v710, 7
      %v712 = vsub.s32 1, %v711
      %v713 = vrot.slane %v485, %v712
      %v714 = vlaneseq
      %v715 = vshrl.u32 %v714, 7
      %v716 = vsub.s32 0, %v715
      %v717 = vrot.slane %v510, %v716
      %v718 = vlaneseq
      %v719 = vshrl.u32 %v718, 7
      %v720 = vsub.s32 1, %v719
      %v721 = vrot.slane %v510, %v720
      %v722 = vlaneseq
      %v723 = vshrl.u32 %v722, 7
      %v724 = vsub.s32 0, %v723
      %v725 = vrot.slane %v524, %v724
      %v726 = vlaneseq
      %v727 = vshrl.u32 %v726, 7
      %v728 = vsub.s32 1, %v727
      %v729 = vrot.slane %v524, %v728
      %v730 = vlaneseq
      %v731 = vshrl.u32 %v730, 7
      %v732 = vsub.s32 0, %v731
      %v733 = vrot.slane %v532, %v732
      %v734 = vlaneseq
      %v735 = vshrl.u32 %v734, 7
      %v736 = vsub.s32 1, %v735
      %v737 = vrot.slane %v532, %v736
      %v738 = vlaneseq
      %v739 = vshrl.u32 %v738, 7
      %v740 = vsub.s32 0, %v739
      %v741 = vrot.slane %v534, %v740
      %v742 = vlaneseq
      %v743 = vshrl.u32 %v742, 7
      %v744 = vsub.s32 1, %v743
      %v745 = vrot.slane %v534, %v744
      %v746 = vlaneseq
      %v747 = vshrl.u32 %v746, 7
      %v748 = vsub.s32 0, %v747
      %v749 = vrot.slane %v517, %v748
      %v750 = vlaneseq
      %v751 = vshrl.u32 %v750, 7
      %v752 = vsub.s32 1, %v751
      %v753 = vrot.slane %v517, %v752
      %v754 = vlaneseq
      %v755 = vshrl.u32 %v754, 7
      %v756 = vsub.s32 0, %v755
      %v757 = vrot.slane %v531, %v756
      %v758 = vlaneseq
      %v759 = vshrl.u32 %v758, 7
      %v760 = vsub.s32 1, %v759
      %v761 = vrot.slane %v531, %v760
      %v762 = vlaneseq
      %v763 = vshrl.u32 %v762, 7
      %v764 = vsub.s32 0, %v763
      %v765 = vrot.slane %v533, %v764
      %v766 = vlaneseq
      %v767 = vshrl.u32 %v766, 7
      %v768 = vsub.s32 1, %v767
      %v769 = vrot.slane %v533, %v768
      %v770 = vlaneseq
      %v771 = vshrl.u32 %v770, 7
      %v772 = vsub.s32 0, %v771
      %v773 = vrot.slane %v535, %v772
      %v774 = vlaneseq
      %v775 = vshrl.u32 %v774, 7
      %v776 = vsub.s32 1, %v775
      %v777 = vrot.slane %v535, %v776
      %v778 = vlaneseq
      %v779 = vshrl.u32 %v778, 7
      %v780 = vsub.s32 0, %v779
      %v781 = vrot.slane %v560, %v780
      %v782 = vlaneseq
      %v783 = vshrl.u32 %v782, 7
      %v784 = vsub.s32 1, %v783
      %v785 = vrot.slane %v560, %v784
      %v786 = vlaneseq
      %v787 = vshrl.u32 %v786, 7
      %v788 = vsub.s32 0, %v787
      %v789 = vrot.slane %v574, %v788
      %v790 = vlaneseq
      %v791 = vshrl.u32 %v790, 7
      %v792 = vsub.s32 1, %v791
      %v793 = vrot.slane %v574, %v792
      %v794 = vlaneseq
      %v795 = vshrl.u32 %v794, 7
      %v796 = vsub.s32 0, %v795
      %v797 = vrot.slane %v582, %v796
      %v798 = vlaneseq
      %v799 = vshrl.u32 %v798, 7
      %v800 = vsub.s32 1, %v799
      %v801 = vrot.slane %v582, %v800
      %v802 = vlaneseq
      %v803 = vshrl.u32 %v802, 7
      %v804 = vsub.s32 0, %v803
      %v805 = vrot.slane %v584, %v804
      %v806 = vlaneseq
      %v807 = vshrl.u32 %v806, 7
      %v808 = vsub.s32 1, %v807
      %v809 = vrot.slane %v584, %v808
      %v810 = vlaneseq
      %v811 = vshrl.u32 %v810, 7
      %v812 = vsub.s32 0, %v811
      %v813 = vrot.slane %v567, %v812
      %v814 = vlaneseq
      %v815 = vshrl.u32 %v814, 7
      %v816 = vsub.s32 1, %v815
      %v817 = vrot.slane %v567, %v816
      %v818 = vlaneseq
      %v819 = vshrl.u32 %v818, 7
      %v820 = vsub.s32 0, %v819
      %v821 = vrot.slane %v581, %v820
      %v822 = vlaneseq
      %v823 = vshrl.u32 %v822, 7
      %v824 = vsub.s32 1, %v823
      %v825 = vrot.slane %v581, %v824
      %v826 = vlaneseq
      %v827 = vshrl.u32 %v826, 7
      %v828 = vsub.s32 0, %v827
      %v829 = vrot.slane %v583, %v828
      %v830 = vlaneseq
      %v831 = vshrl.u32 %v830, 7
      %v832 = vsub.s32 1, %v831
      %v833 = vrot.slane %v583, %v832
      %v834 = vlaneseq
      %v835 = vshrl.u32 %v834, 7
      %v836 = vsub.s32 0, %v835
      %v837 = vrot.slane %v585, %v836
      %v838 = vlaneseq
      %v839 = vshrl.u32 %v838, 7
      %v840 = vsub.s32 1, %v839
      %v841 = vrot.slane %v585, %v840
      %vm906 = vcmask 1040384
      %v907 = vsel %vm906, %v589, 0.0
      %v908 = vsel %vm906, %v593, 0.0
      %v909 = vadd.f32 %v907, %v908
      %910 = vadd.xlane.f32.xlu0 %v909
      %v911 = vpop.xlane.xlu0 %910
      %v912 = vsel %vm906, %v597, 0.0
      %v913 = vsel %vm906, %v601, 0.0
      %v914 = vadd.f32 %v912, %v913
      %915 = vadd.xlane.f32.xlu0 %v914
      %v916 = vpop.xlane.xlu0 %915
      %v917 = vsel %vm906, %v605, 0.0
      %v918 = vsel %vm906, %v609, 0.0
      %v919 = vadd.f32 %v917, %v918
      %920 = vadd.xlane.f32.xlu0 %v919
      %v921 = vpop.xlane.xlu0 %920
      %v922 = vsel %vm906, %v613, 0.0
      %v923 = vsel %vm906, %v617, 0.0
      %v924 = vadd.f32 %v922, %v923
      %925 = vadd.xlane.f32.xlu0 %v924
      %v926 = vpop.xlane.xlu0 %925
      %v927 = vsel %vm906, %v621, 0.0
      %v928 = vsel %vm906, %v625, 0.0
      %v929 = vadd.f32 %v927, %v928
      %930 = vadd.xlane.f32.xlu0 %v929
      %v931 = vpop.xlane.xlu0 %930
      %v932 = vsel %vm906, %v629, 0.0
      %v933 = vsel %vm906, %v633, 0.0
      %v934 = vadd.f32 %v932, %v933
      %935 = vadd.xlane.f32.xlu0 %v934
      %v936 = vpop.xlane.xlu0 %935
      %v937 = vsel %vm906, %v637, 0.0
      %v938 = vsel %vm906, %v641, 0.0
      %v939 = vadd.f32 %v937, %v938
      %940 = vadd.xlane.f32.xlu0 %v939
      %v941 = vpop.xlane.xlu0 %940
      %v942 = vsel %vm906, %v645, 0.0
      %v943 = vsel %vm906, %v649, 0.0
      %v944 = vadd.f32 %v942, %v943
      %945 = vadd.xlane.f32.xlu0 %v944
      %v946 = vpop.xlane.xlu0 %945
      %v947 = vsel %vm906, %v653, 0.0
      %v948 = vsel %vm906, %v657, 0.0
      %v949 = vadd.f32 %v947, %v948
      %950 = vadd.xlane.f32.xlu0 %v949
      %v951 = vpop.xlane.xlu0 %950
      %v952 = vsel %vm906, %v661, 0.0
      %v953 = vsel %vm906, %v665, 0.0
      %v954 = vadd.f32 %v952, %v953
      %955 = vadd.xlane.f32.xlu0 %v954
      %v956 = vpop.xlane.xlu0 %955
      %v957 = vsel %vm906, %v669, 0.0
      %v958 = vsel %vm906, %v673, 0.0
      %v959 = vadd.f32 %v957, %v958
      %960 = vadd.xlane.f32.xlu0 %v959
      %v961 = vpop.xlane.xlu0 %960
      %v962 = vsel %vm906, %v677, 0.0
      %v963 = vsel %vm906, %v681, 0.0
      %v964 = vadd.f32 %v962, %v963
      %965 = vadd.xlane.f32.xlu0 %v964
      %v966 = vpop.xlane.xlu0 %965
      %v967 = vsel %vm906, %v685, 0.0
      %v968 = vsel %vm906, %v689, 0.0
      %v969 = vadd.f32 %v967, %v968
      %970 = vadd.xlane.f32.xlu0 %v969
      %v971 = vpop.xlane.xlu0 %970
      %v972 = vsel %vm906, %v693, 0.0
      %v973 = vsel %vm906, %v697, 0.0
      %v974 = vadd.f32 %v972, %v973
      %975 = vadd.xlane.f32.xlu0 %v974
      %v976 = vpop.xlane.xlu0 %975
      %v977 = vsel %vm906, %v701, 0.0
      %v978 = vsel %vm906, %v705, 0.0
      %v979 = vadd.f32 %v977, %v978
      %980 = vadd.xlane.f32.xlu0 %v979
      %v981 = vpop.xlane.xlu0 %980
      %v982 = vsel %vm906, %v709, 0.0
      %v983 = vsel %vm906, %v713, 0.0
      %v984 = vadd.f32 %v982, %v983
      %985 = vadd.xlane.f32.xlu0 %v984
      %v986 = vpop.xlane.xlu0 %985
      %v987 = vsel %vm906, %v717, 0.0
      %v988 = vsel %vm906, %v721, 0.0
      %v989 = vadd.f32 %v987, %v988
      %990 = vadd.xlane.f32.xlu0 %v989
      %v991 = vpop.xlane.xlu0 %990
      %v992 = vsel %vm906, %v725, 0.0
      %v993 = vsel %vm906, %v729, 0.0
      %v994 = vadd.f32 %v992, %v993
      %995 = vadd.xlane.f32.xlu0 %v994
      %v996 = vpop.xlane.xlu0 %995
      %v997 = vsel %vm906, %v733, 0.0
      %v998 = vsel %vm906, %v737, 0.0
      %v999 = vadd.f32 %v997, %v998
      %1000 = vadd.xlane.f32.xlu0 %v999
      %v1001 = vpop.xlane.xlu0 %1000
      %v1002 = vsel %vm906, %v741, 0.0
      %v1003 = vsel %vm906, %v745, 0.0
      %v1004 = vadd.f32 %v1002, %v1003
      %1005 = vadd.xlane.f32.xlu0 %v1004
      %v1006 = vpop.xlane.xlu0 %1005
      %v1007 = vsel %vm906, %v749, 0.0
      %v1008 = vsel %vm906, %v753, 0.0
      %v1009 = vadd.f32 %v1007, %v1008
      %1010 = vadd.xlane.f32.xlu0 %v1009
      %v1011 = vpop.xlane.xlu0 %1010
      %v1012 = vsel %vm906, %v757, 0.0
      %v1013 = vsel %vm906, %v761, 0.0
      %v1014 = vadd.f32 %v1012, %v1013
      %1015 = vadd.xlane.f32.xlu0 %v1014
      %v1016 = vpop.xlane.xlu0 %1015
      %v1017 = vsel %vm906, %v765, 0.0
      %v1018 = vsel %vm906, %v769, 0.0
      %v1019 = vadd.f32 %v1017, %v1018
      %1020 = vadd.xlane.f32.xlu0 %v1019
      %v1021 = vpop.xlane.xlu0 %1020
      %v1022 = vsel %vm906, %v773, 0.0
      %v1023 = vsel %vm906, %v777, 0.0
      %v1024 = vadd.f32 %v1022, %v1023
      %1025 = vadd.xlane.f32.xlu0 %v1024
      %v1026 = vpop.xlane.xlu0 %1025
      %v1027 = vsel %vm906, %v781, 0.0
      %v1028 = vsel %vm906, %v785, 0.0
      %v1029 = vadd.f32 %v1027, %v1028
      %1030 = vadd.xlane.f32.xlu0 %v1029
      %v1031 = vpop.xlane.xlu0 %1030
      %v1032 = vsel %vm906, %v789, 0.0
      %v1033 = vsel %vm906, %v793, 0.0
      %v1034 = vadd.f32 %v1032, %v1033
      %1035 = vadd.xlane.f32.xlu0 %v1034
      %v1036 = vpop.xlane.xlu0 %1035
      %v1037 = vsel %vm906, %v797, 0.0
      %v1038 = vsel %vm906, %v801, 0.0
      %v1039 = vadd.f32 %v1037, %v1038
      %1040 = vadd.xlane.f32.xlu0 %v1039
      %v1041 = vpop.xlane.xlu0 %1040
      %v1042 = vsel %vm906, %v805, 0.0
      %v1043 = vsel %vm906, %v809, 0.0
      %v1044 = vadd.f32 %v1042, %v1043
      %1045 = vadd.xlane.f32.xlu0 %v1044
      %v1046 = vpop.xlane.xlu0 %1045
      %v1047 = vsel %vm906, %v813, 0.0
      %v1048 = vsel %vm906, %v817, 0.0
      %v1049 = vadd.f32 %v1047, %v1048
      %1050 = vadd.xlane.f32.xlu0 %v1049
      %v1051 = vpop.xlane.xlu0 %1050
      %v1052 = vsel %vm906, %v821, 0.0
      %v1053 = vsel %vm906, %v825, 0.0
      %v1054 = vadd.f32 %v1052, %v1053
      %1055 = vadd.xlane.f32.xlu0 %v1054
      %v1056 = vpop.xlane.xlu0 %1055
      %v1057 = vsel %vm906, %v829, 0.0
      %v1058 = vsel %vm906, %v833, 0.0
      %v1059 = vadd.f32 %v1057, %v1058
      %1060 = vadd.xlane.f32.xlu0 %v1059
      %v1061 = vpop.xlane.xlu0 %1060
      %v1062 = vsel %vm906, %v837, 0.0
      %v1063 = vsel %vm906, %v841, 0.0
      %v1064 = vadd.f32 %v1062, %v1063
      %1065 = vadd.xlane.f32.xlu0 %v1064
      %v1066 = vpop.xlane.xlu0 %1065
      %v1067 = vrcp.pop 256.0
      %v1068 = vmul.f32 %v911, %v1067
      %v1069 = vmul.f32 %v916, %v1067
      %v1070 = vmul.f32 %v921, %v1067
      %v1071 = vmul.f32 %v926, %v1067
      %v1072 = vmul.f32 %v931, %v1067
      %v1073 = vmul.f32 %v936, %v1067
      %v1074 = vmul.f32 %v941, %v1067
      %v1075 = vmul.f32 %v946, %v1067
      %v1076 = vmul.f32 %v951, %v1067
      %v1077 = vmul.f32 %v956, %v1067
      %v1078 = vmul.f32 %v961, %v1067
      %v1079 = vmul.f32 %v966, %v1067
      %v1080 = vmul.f32 %v971, %v1067
      %v1081 = vmul.f32 %v976, %v1067
      %v1082 = vmul.f32 %v981, %v1067
      %v1083 = vmul.f32 %v986, %v1067
      %v1084 = vmul.f32 %v991, %v1067
      %v1085 = vmul.f32 %v996, %v1067
      %v1086 = vmul.f32 %v1001, %v1067
      %v1087 = vmul.f32 %v1006, %v1067
      %v1088 = vmul.f32 %v1011, %v1067
      %v1089 = vmul.f32 %v1016, %v1067
      %v1090 = vmul.f32 %v1021, %v1067
      %v1091 = vmul.f32 %v1026, %v1067
      %v1092 = vmul.f32 %v1031, %v1067
      %v1093 = vmul.f32 %v1036, %v1067
      %v1094 = vmul.f32 %v1041, %v1067
      %v1095 = vmul.f32 %v1046, %v1067
      %v1096 = vmul.f32 %v1051, %v1067
      %v1097 = vmul.f32 %v1056, %v1067
      %v1098 = vmul.f32 %v1061, %v1067
      %v1099 = vmul.f32 %v1066, %v1067
      %v1100 = vld [vmem:[%s3] sm:$0xff]
      %v1101 = vld [vmem:[%s4] sm:$0xff]
      %v1134 = vrot.slane %v1069, 7
      %vm1135 = vcmask 1041409
      %v1136 = vsel %vm1135, %v1134, %v1068
      %v1137 = vrot.slane %v1070, 6
      %vm1138 = vcmask 1042434
      %v1139 = vsel %vm1138, %v1137, %v1136
      %v1140 = vrot.slane %v1071, 5
      %vm1141 = vcmask 1043459
      %v1142 = vsel %vm1141, %v1140, %v1139
      %v1143 = vrot.slane %v1072, 4
      %vm1144 = vcmask 1044484
      %v1145 = vsel %vm1144, %v1143, %v1142
      %v1146 = vrot.slane %v1073, 3
      %vm1147 = vcmask 1045509
      %v1148 = vsel %vm1147, %v1146, %v1145
      %v1149 = vrot.slane %v1074, 2
      %vm1150 = vcmask 1046534
      %v1151 = vsel %vm1150, %v1149, %v1148
      %v1152 = vrot.slane %v1075, 1
      %vm1153 = vcmask 1047559
      %v1154 = vsel %vm1153, %v1152, %v1151
      %v1155 = vrot.slane %v1077, 7
      %v1156 = vsel %vm1135, %v1155, %v1076
      %v1157 = vrot.slane %v1078, 6
      %v1158 = vsel %vm1138, %v1157, %v1156
      %v1159 = vrot.slane %v1079, 5
      %v1160 = vsel %vm1141, %v1159, %v1158
      %v1161 = vrot.slane %v1080, 4
      %v1162 = vsel %vm1144, %v1161, %v1160
      %v1163 = vrot.slane %v1081, 3
      %v1164 = vsel %vm1147, %v1163, %v1162
      %v1165 = vrot.slane %v1082, 2
      %v1166 = vsel %vm1150, %v1165, %v1164
      %v1167 = vrot.slane %v1083, 1
      %v1168 = vsel %vm1153, %v1167, %v1166
      %v1169 = vrot.slane %v1085, 7
      %v1170 = vsel %vm1135, %v1169, %v1084
      %v1171 = vrot.slane %v1086, 6
      %v1172 = vsel %vm1138, %v1171, %v1170
      %v1173 = vrot.slane %v1087, 5
      %v1174 = vsel %vm1141, %v1173, %v1172
      %v1175 = vrot.slane %v1088, 4
      %v1176 = vsel %vm1144, %v1175, %v1174
      %v1177 = vrot.slane %v1089, 3
      %v1178 = vsel %vm1147, %v1177, %v1176
      %v1179 = vrot.slane %v1090, 2
      %v1180 = vsel %vm1150, %v1179, %v1178
      %v1181 = vrot.slane %v1091, 1
      %v1182 = vsel %vm1153, %v1181, %v1180
      %v1183 = vrot.slane %v1093, 7
      %v1184 = vsel %vm1135, %v1183, %v1092
      %v1185 = vrot.slane %v1094, 6
      %v1186 = vsel %vm1138, %v1185, %v1184
      %v1187 = vrot.slane %v1095, 5
      %v1188 = vsel %vm1141, %v1187, %v1186
      %v1189 = vrot.slane %v1096, 4
      %v1190 = vsel %vm1144, %v1189, %v1188
      %v1191 = vrot.slane %v1097, 3
      %v1192 = vsel %vm1147, %v1191, %v1190
      %v1193 = vrot.slane %v1098, 2
      %v1194 = vsel %vm1150, %v1193, %v1192
      %v1195 = vrot.slane %v1099, 1
      %v1196 = vsel %vm1153, %v1195, %v1194
      %vm1201 = vcmask 261120
      %v1203 = vsel %vm1201, %v1100, 0
      %1205 = vmatprep.subr.mxu0 0.0
      %1206 = vmatpush1.msra.mxu0 %v1154
      %1207 = vmatprep.subr.mxu0 0.0
      %1208 = vmatpush1.msra.mxu0 %v1168
      %1209 = vmatprep.subr.mxu0 0.0
      %1210 = vmatpush1.msra.mxu0 %v1182
      %1211 = vmatprep.subr.mxu0 0.0
      %1212 = vmatpush1.msra.mxu0 %v1196
      %1213 = vmatprep.subr.mxu0 0.0
      %1214 = vmatpush1.msra.mxu0 0.0
      %1215 = vmatprep.subr.mxu0 0.0
      %1216 = vmatpush1.msra.mxu0 0.0
      %1217 = vmatprep.subr.mxu0 0.0
      %1218 = vmatpush1.msra.mxu0 0.0
      %1219 = vmatprep.subr.mxu0 0.0
      %1220 = vmatpush1.msra.mxu0 0.0
      %1221 = vmatprep.subr.mxu0 0.0
      %1222 = vmatpush1.msra.mxu0 0.0
      %1223 = vmatprep.subr.mxu0 0.0
      %1224 = vmatpush1.msra.mxu0 0.0
      %1225 = vmatprep.subr.mxu0 0.0
      %1226 = vmatpush1.msra.mxu0 0.0
      %1227 = vmatprep.subr.mxu0 0.0
      %1228 = vmatpush1.msra.mxu0 0.0
      %1229 = vmatprep.subr.mxu0 0.0
      %1230 = vmatpush1.msra.mxu0 0.0
      %1231 = vmatprep.subr.mxu0 0.0
      %1232 = vmatpush1.msra.mxu0 0.0
      %1233 = vmatprep.subr.mxu0 0.0
      %1234 = vmatpush1.msra.mxu0 0.0
      %1235 = vmatprep.subr.mxu0 0.0
      %1236 = vmatpush1.msra.mxu0 0.0
      %1237 = vmatprep.subr.mxu0 0.0
      %1238 = vmatpush1.msra.mxu0 0.0
      %1239 = vmatprep.subr.mxu0 0.0
      %1240 = vmatpush1.msra.mxu0 0.0
      %1241 = vmatprep.subr.mxu0 0.0
      %1242 = vmatpush1.msra.mxu0 0.0
      %1243 = vmatprep.subr.mxu0 0.0
      %1244 = vmatpush1.msra.mxu0 0.0
      %1245 = vmatprep.subr.mxu0 0.0
      %1246 = vmatpush1.msra.mxu0 0.0
      %1247 = vmatprep.subr.mxu0 0.0
      %1248 = vmatpush1.msra.mxu0 0.0
      %1249 = vmatprep.subr.mxu0 0.0
      %1250 = vmatpush1.msra.mxu0 0.0
      %1251 = vmatprep.subr.mxu0 0.0
      %1252 = vmatpush1.msra.mxu0 0.0
      %1253 = vmatprep.subr.mxu0 0.0
      %1254 = vmatpush1.msra.mxu0 0.0
      %1255 = vmatprep.subr.mxu0 0.0
      %1256 = vmatpush1.msra.mxu0 0.0
      %1257 = vmatprep.subr.mxu0 0.0
      %1258 = vmatpush1.msra.mxu0 0.0
      %1259 = vmatprep.subr.mxu0 0.0
      %1260 = vmatpush1.msra.mxu0 0.0
      %1261 = vmatprep.subr.mxu0 0.0
      %1262 = vmatpush1.msra.mxu0 0.0
      %1263 = vmatprep.subr.mxu0 0.0
      %1264 = vmatpush1.msra.mxu0 0.0
      %1265 = vmatprep.subr.mxu0 0.0
      %1266 = vmatpush1.msra.mxu0 0.0
      %1267 = vmatprep.subr.mxu0 0.0
      %1268 = vmatpush1.msra.mxu0 0.0
      %1269 = vmatprep.mubr.f32.mxu0 0.0
      %1270 = vmatmul.mubr.f32.gmra.mrb[0].mxu0 %v1203
      %v1271 = vpop.f32.mrb[0].mxu0
      %v1272 = vadd.f32 %v1101, %v1271
      %v1273 = vpop.f32.mrb[0].mxu0
      %1274 = vdwg.mxu0
      %vm1275 = vcmask 7168
      %1276 = vst.msk [vmem:[%s222] sm:$0xff] %vm1275, %v1272
      %p1277 = scmp.lt.s32.totalorder %s16, 1
      %s1278 = scalar_select %p1277, %s16, 1
      %s1279 = smul.addr %s1278, 8
      %s1280 = scalar_lea.vmem %s5, %s1279
      // Predicated region
      $region41: #{phasenet_forward.1} parent=39 // pred_check
        %p1281 = pneg %p144
      $region42: #{phasenet_forward.1} parent=39 // pred_check_branch
        %1283 = sbr.rel (%p1281) target = $region44
      $region43: #{phasenet_forward.1} parent=39 // pred_region
        _
      $region44: #{phasenet_forward.1} parent=39 // pred_fallthru
        _
    $region40: #{phasenet_forward.1} parent=5 // pred_fallthru
      _
    %p1284 = scmp.le.s32.totalorder 2, %s11
    // Predicated region
    $region45: #{phasenet_forward.1} parent=5 // pred_check
      %p1285 = pneg %p1284
    $region46: #{phasenet_forward.1} parent=5 // pred_check_branch
      %1287 = sbr.rel (%p1285) target = $region48
    $region47: #{phasenet_forward.1} parent=5 // pred_region
      %s1288 = ssub.s32 %s11, 2
      // Predicated region
      $region49: #{phasenet_forward.1} parent=47 // pred_check
        %p1289 = pneg %p150
      $region50: #{phasenet_forward.1} parent=47 // pred_check_branch
        %1291 = sbr.rel (%p1289) target = $region52
      $region51: #{phasenet_forward.1} parent=47 // pred_region
        %p1292 = scmp.lt.s32.totalorder %s17, 1
        %s1293 = scalar_select %p1292, %s17, 1
        %s1294 = smul.addr %s1293, 8
        %s1295 = scalar_lea.vmem %s5, %s1294
      $region52: #{phasenet_forward.1} parent=47 // pred_fallthru
        _
    $region48: #{phasenet_forward.1} parent=5 // pred_fallthru
      _
  $region6: #{phasenet_forward.1} parent=0 // loop_footer
    %s15 = sadd.s32 1, %s11
  $region7: #{phasenet_forward.1} parent=0 // loop_footer_branch
    %10 = sbr.rel target = $region3
  $region8: #{phasenet_forward.1} parent=0 // loop_exit
    _

</llo_original>
